<compile_context>
chip_gen: v6e
topology: v6e:2x2x1
jax: 0.10.0
libtpu: 0.0.40
codegen_flags: <defaults>
</compile_context>

<pallas_src>
import functools

import jax
import jax.numpy as jnp
from jax import lax
from jax.experimental import pallas as pl
from jax.experimental.pallas import tpu as pltpu


def _round_up(x, m):
    return (x + m - 1) // m * m


def _mf_kernel(u_idx_ref, i_idx_ref, u_tab_ref, i_tab_ref, o_ref,
               u_stage, i_stage, *, tb, batch):
    # u_idx_ref / i_idx_ref : SMEM (B_pad,) int32   (scalar-prefetched)
    # u_tab_ref / i_tab_ref : VMEM (N_pad, E_pad)   (table-resident)
    # o_ref                 : VMEM (1, tb)          (lane-dense output tile)
    # u_stage / i_stage     : VMEM (tb, E_pad) f32  (gather staging scratch)
    t = pl.program_id(0)
    base = t * tb

    # Only gather rows that correspond to real batch elements.  Rows past
    # n_valid keep stale scratch contents; their (garbage) reductions land in
    # padded output lanes that the wrapper discards.
    n_valid = jnp.minimum(batch - base, tb)

    def gather_row(b, carry):
        u_idx = u_idx_ref[base + b]
        i_idx = i_idx_ref[base + b]
        u_stage[pl.ds(b, 1), :] = u_tab_ref[pl.ds(u_idx, 1), :].astype(jnp.float32)
        i_stage[pl.ds(b, 1), :] = i_tab_ref[pl.ds(i_idx, 1), :].astype(jnp.float32)
        return carry

    lax.fori_loop(0, n_valid, gather_row, 0)

    # One vectorized multiply + row reduce for the whole batch tile (VPU + XLU;
    # intentionally not routed through the MXU).
    prod = u_stage[...] * i_stage[...]                   # (tb, E_pad) f32
    o_ref[...] = jnp.sum(prod, axis=-1).reshape(1, tb)   # (1, tb)


def matrix_factorization(user, item, user_table, item_table, *, tb=128):
    """user, item: int (B,) index vectors; tables: (N, E) float arrays."""
    B = int(user.shape[0])
    E = int(user_table.shape[1])

    e_pad = _round_up(E, 128)
    b_pad = _round_up(B, tb)
    nu_pad = _round_up(int(user_table.shape[0]), 8)
    ni_pad = _round_up(int(item_table.shape[0]), 8)

    # Zero-pad tables to (N_pad, E_pad); padded lanes contribute 0 to the dot.
    u_tab = jnp.zeros((nu_pad, e_pad), user_table.dtype)
    u_tab = u_tab.at[: user_table.shape[0], :E].set(user_table)
    i_tab = jnp.zeros((ni_pad, e_pad), item_table.dtype)
    i_tab = i_tab.at[: item_table.shape[0], :E].set(item_table)

    # Pad index vectors to B_pad (pad with a valid row index: 0).  Padded
    # entries are never gathered (dynamic loop bound in the kernel).
    u_idx = jnp.zeros((b_pad,), jnp.int32).at[:B].set(user.astype(jnp.int32))
    i_idx = jnp.zeros((b_pad,), jnp.int32).at[:B].set(item.astype(jnp.int32))

    num_tiles = b_pad // tb

    grid_spec = pltpu.PrefetchScalarGridSpec(
        num_scalar_prefetch=2,                 # user indices, item indices -> SMEM
        grid=(num_tiles,),
        in_specs=[
            # Whole tables resident in VMEM (constant block index -> no re-DMA).
            pl.BlockSpec((nu_pad, e_pad), lambda t, u, i: (0, 0)),
            pl.BlockSpec((ni_pad, e_pad), lambda t, u, i: (0, 0)),
        ],
        out_specs=pl.BlockSpec((1, tb), lambda t, u, i: (0, t)),
        scratch_shapes=[
            pltpu.VMEM((tb, e_pad), jnp.float32),
            pltpu.VMEM((tb, e_pad), jnp.float32),
        ],
    )

    out = pl.pallas_call(
        functools.partial(_mf_kernel, tb=tb, batch=B),
        out_shape=jax.ShapeDtypeStruct((1, b_pad), jnp.float32),
        grid_spec=grid_spec,
        compiler_params=pltpu.CompilerParams(
            dimension_semantics=("parallel",),   # batch tiles are independent
        ),
    )(u_idx, i_idx, u_tab, i_tab)

    return out.reshape(b_pad)[:B]


def reference(user, item, user_table, item_table):
    return jnp.sum(user_table[user] * item_table[item], axis=1)


if __name__ == "__main__":
    num_users, num_items, embedding_size = 64, 48, 20
    batch = 8

    key = jax.random.PRNGKey(0)
    k_u, k_i, k_bu, k_bi = jax.random.split(key, 4)

    # nn.Embedding default init ~ N(0, 1)
    user_table = jax.random.normal(k_u, (num_users, embedding_size), dtype=jnp.float32)
    item_table = jax.random.normal(k_i, (num_items, embedding_size), dtype=jnp.float32)

    user = jax.random.randint(k_bu, (batch,), 0, num_users, dtype=jnp.int32)
    item = jax.random.randint(k_bi, (batch,), 0, num_items, dtype=jnp.int32)

    out = matrix_factorization(user, item, user_table, item_table)
    out = jax.block_until_ready(out)

    ref = reference(user, item, user_table, item_table)
    assert out.shape == (batch,)
    assert jnp.allclose(out, ref, atol=1e-5, rtol=1e-5), (out, ref)

    print("KERNEL_OK")
</pallas_src>

<mosaic_0001>
module attributes {stable_mosaic.version = 11 : i64} {
  func.func @_mf_kernel(%arg0: i32, %arg1: memref<128xi32, #tpu.memory_space<smem>>, %arg2: memref<128xi32, #tpu.memory_space<smem>>, %arg3: memref<64x128xf32, #tpu.memory_space<vmem>>, %arg4: memref<48x128xf32, #tpu.memory_space<vmem>>, %arg5: memref<1x128xf32, #tpu.memory_space<vmem>>, %arg6: memref<128x128xf32, #tpu.memory_space<vmem>>, %arg7: memref<128x128xf32, #tpu.memory_space<vmem>>) attributes {dimension_semantics = [#tpu.dimension_semantics<parallel>], iteration_bounds = array<i64: 1>, scalar_prefetch = 2 : i64, scratch_operands = 2 : i64, tpu.core_type = #tpu.core_type<tc>, window_params = [{pipeline_mode = #tpu.pipeline_mode<synchronous>, transform_indices = @transform_0, window_bounds = array<i64: 64, 128>}, {pipeline_mode = #tpu.pipeline_mode<synchronous>, transform_indices = @transform_1, window_bounds = array<i64: 48, 128>}, {transform_indices = @transform_2, window_bounds = array<i64: 1, 128>}]} {
    %c128_i32 = arith.constant 128 : i32
    %0 = arith.muli %arg0, %c128_i32 : i32
    %c8_i32 = arith.constant 8 : i32
    %1 = arith.subi %c8_i32, %0 : i32
    %c128_i32_0 = arith.constant 128 : i32
    %2 = arith.minsi %1, %c128_i32_0 : i32
    %c0_i32 = arith.constant 0 : i32
    %c0_i32_1 = arith.constant 0 : i32
    %3 = arith.subi %2, %c0_i32_1 : i32
    %4 = arith.addi %c0_i32_1, %3 : i32
    %c1_i32 = arith.constant 1 : i32
    scf.for %arg8 = %c0_i32_1 to %4 step %c1_i32  : i32 {
      %11 = arith.addi %0, %arg8 : i32
      %12 = arith.index_cast %11 : i32 to index
      %13 = memref.load %arg1[%12] : memref<128xi32, #tpu.memory_space<smem>>
      %14 = arith.addi %0, %arg8 : i32
      %15 = arith.index_cast %14 : i32 to index
      %16 = memref.load %arg2[%15] : memref<128xi32, #tpu.memory_space<smem>>
      %17 = arith.index_cast %13 : i32 to index
      %c0_7 = arith.constant 0 : index
      %18 = vector.load %arg3[%17, %c0_7] : memref<64x128xf32, #tpu.memory_space<vmem>>, vector<1x128xf32>
      %19 = arith.index_cast %arg8 : i32 to index
      %c0_8 = arith.constant 0 : index
      %20 = vector.load %arg6[%19, %c0_8] : memref<128x128xf32, #tpu.memory_space<vmem>>, vector<1x128xf32>
      tpu.vector_store %arg6[%19, %c0_8], %18 {strides = array<i32>} : memref<128x128xf32, #tpu.memory_space<vmem>>, vector<1x128xf32>,
      %21 = arith.index_cast %16 : i32 to index
      %c0_9 = arith.constant 0 : index
      %22 = vector.load %arg4[%21, %c0_9] : memref<48x128xf32, #tpu.memory_space<vmem>>, vector<1x128xf32>
      %23 = arith.index_cast %arg8 : i32 to index
      %c0_10 = arith.constant 0 : index
      %24 = vector.load %arg7[%23, %c0_10] : memref<128x128xf32, #tpu.memory_space<vmem>>, vector<1x128xf32>
      tpu.vector_store %arg7[%23, %c0_10], %22 {strides = array<i32>} : memref<128x128xf32, #tpu.memory_space<vmem>>, vector<1x128xf32>,
    }
    %c0 = arith.constant 0 : index
    %c0_2 = arith.constant 0 : index
    %5 = vector.load %arg6[%c0, %c0_2] : memref<128x128xf32, #tpu.memory_space<vmem>>, vector<128x128xf32>
    %c0_3 = arith.constant 0 : index
    %c0_4 = arith.constant 0 : index
    %6 = vector.load %arg7[%c0_3, %c0_4] : memref<128x128xf32, #tpu.memory_space<vmem>>, vector<128x128xf32>
    %7 = arith.mulf %5, %6 : vector<128x128xf32>
    %cst = arith.constant dense<0.000000e+00> : vector<128xf32>
    %8 = vector.multi_reduction <add>, %7, %cst [1] : vector<128x128xf32> to vector<128xf32>
    %9 = vector.shape_cast %8 : vector<128xf32> to vector<1x128xf32>
    %c0_5 = arith.constant 0 : index
    %c0_6 = arith.constant 0 : index
    %10 = vector.load %arg5[%c0_5, %c0_6] : memref<1x128xf32, #tpu.memory_space<vmem>>, vector<1x128xf32>
    tpu.vector_store %arg5[%c0_5, %c0_6], %9 {strides = array<i32>} : memref<1x128xf32, #tpu.memory_space<vmem>>, vector<1x128xf32>,
    return
  }
  func.func @transform_0(%arg0: i32, %arg1: memref<128xi32, #tpu.memory_space<smem>>, %arg2: memref<128xi32, #tpu.memory_space<smem>>) -> (i32, i32) {
    %c0_i32 = arith.constant 0 : i32
    %c0_i32_0 = arith.constant 0 : i32
    %c0_i32_1 = arith.constant 0 : i32
    return %c0_i32, %c0_i32_0 : i32, i32
  }
  func.func @transform_1(%arg0: i32, %arg1: memref<128xi32, #tpu.memory_space<smem>>, %arg2: memref<128xi32, #tpu.memory_space<smem>>) -> (i32, i32) {
    %c0_i32 = arith.constant 0 : i32
    %c0_i32_0 = arith.constant 0 : i32
    %c0_i32_1 = arith.constant 0 : i32
    return %c0_i32, %c0_i32_0 : i32, i32
  }
  func.func @transform_2(%arg0: i32, %arg1: memref<128xi32, #tpu.memory_space<smem>>, %arg2: memref<128xi32, #tpu.memory_space<smem>>) -> (i32, i32) {
    %c0_i32 = arith.constant 0 : i32
    %c0_i32_0 = arith.constant 0 : i32
    return %c0_i32, %arg0 : i32, i32
  }
}

</mosaic_0001>

<llo_original>
// kernel: tpu_custom_call.1
$region0: #{tpu_custom_call.1}
  #allocation0 [shape = 'u32[]', space=smem, size = 0x4, offset = 0x4, fixed_abs, tag = 'smem constant byte address 0x4 - core index']
  #allocation1 [shape = 'u32[144,128]{1,0:T(1,128)}', space=vmem, size = 0x12000, scoped, tag = 'internal scratch']
  #allocation2 [shape = 'f32[128,128]{1,0:T(8,128)}', space=vmem, size = 0x10000, scoped, tag = 'scratch operand']
  #allocation3 [shape = 'f32[128,128]{1,0:T(8,128)}', space=vmem, size = 0x10000, scoped, tag = 'scratch operand']
  #allocation4 [shape = 's32[1]{0}', space=sflag, size = 0x4, scoped, tag = 'scoped memory for tpu_custom_call.1']
  #allocation5 [shape = 'u8[512]{0}', space=smem, size = 0x200, scoped, tag = 'prefetched SMEM operand 0']
  #allocation6 [shape = 'u8[512]{0}', space=smem, size = 0x200, scoped, tag = 'prefetched SMEM operand 1']
  %s0 = inlined_call_operand.hbm [shape: s32[128], index: 0, kind: input, shape index: {}]
  %s1 = inlined_call_operand.vmem [shape: s32[128], index: 1, kind: input, shape index: {}]
  %s2 = inlined_call_operand.hbm [shape: f32[64,128], index: 2, kind: input, shape index: {}]
  %s3 = inlined_call_operand.hbm [shape: f32[48,128], index: 3, kind: input, shape index: {}]
  %s4 = inlined_call_operand.hbm [shape: f32[1,128], index: 4, kind: output, shape index: {}]
  %s5 = sld [smem:[#allocation0]]
  $region33: #{tpu_custom_call.1} parent=0
    _
  %s7 = ssub.s32 1, %s5
  %s8 = scalar_select 0, %s7, %s5
  %10 = dma.hbm_to_smem %s0, 16, [#allocation5], [#allocation4]
  %s11 = sshll.u32 %s1, 4
  %s12 = int_to_ptr.vmem [resolvable:$true] %s11
  %14 = dma.vmem_to_smem %s12, 16, [#allocation6], [#allocation4]
  %15 = dma.done [#allocation4], 32
  %16 = sfence
  $region1: #{tpu_custom_call.1} parent=0
    #allocation7 [shape = 'u8[32768]{0}', space=vmem, size = 0x8000, scoped, tag = 'input window, operand 2, single buffered']
    #allocation8 [shape = 's32[1]{0}', space=sflag, size = 0x4, scoped, tag = 'scoped memory for tpu_custom_call.1']
    #allocation9 [shape = 's32[1]{0}', space=sflag, size = 0x4, scoped, tag = 'scoped memory for tpu_custom_call.1']
    #allocation10 [shape = 'u8[24576]{0}', space=vmem, size = 0x6000, scoped, tag = 'input window, operand 3, single buffered']
    #allocation11 [shape = 's32[1]{0}', space=sflag, size = 0x4, scoped, tag = 'scoped memory for tpu_custom_call.1']
    #allocation12 [shape = 'u8[512]{0}', space=vmem, size = 0x400, scoped, tag = 'output window, operand 0, single buffered']
    %17 = vsyncpa [#allocation8], 0
    %18 = vsyncpa [#allocation11], 0
    %19 = vsyncpa [#allocation9], 0
    // Predicated region
    $region2: #{tpu_custom_call.1} parent=1 // pred_check
      _
    $region3: #{tpu_custom_call.1} parent=1 // pred_check_branch
      %21 = sbr.rel (0) target = $region5
    $region4: #{tpu_custom_call.1} parent=1 // pred_region
      %s23 = ssub.s32 1024, 1024
      %24 = vsyncadd [#allocation8], %s23
      %s25 = sshll.u32 [#allocation7], 4
      %s26 = int_to_ptr.vmem [resolvable:$true] %s25
      %31 = dma.hbm_to_vmem [thread:$0]  %s2, 1024, %s26, [#allocation8], 128, 128, 8
    $region5: #{tpu_custom_call.1} parent=1 // pred_fallthru
      _
    // Predicated region
    $region6: #{tpu_custom_call.1} parent=1 // pred_check
      _
    $region7: #{tpu_custom_call.1} parent=1 // pred_check_branch
      %33 = sbr.rel (0) target = $region9
    $region8: #{tpu_custom_call.1} parent=1 // pred_region
      %s35 = ssub.s32 768, 768
      %36 = vsyncadd [#allocation11], %s35
      %s37 = sshll.u32 [#allocation10], 4
      %s38 = int_to_ptr.vmem [resolvable:$true] %s37
      %43 = dma.hbm_to_vmem [thread:$0]  %s3, 768, %s38, [#allocation11], 128, 128, 8
    $region9: #{tpu_custom_call.1} parent=1 // pred_fallthru
      _
    // Predicated region
    $region10: #{tpu_custom_call.1} parent=1 // pred_check
      _
    $region11: #{tpu_custom_call.1} parent=1 // pred_check_branch
      %45 = sbr.rel (0) target = $region13
    $region12: #{tpu_custom_call.1} parent=1 // pred_region
      %46 = dma.done [#allocation8], 1024
    $region13: #{tpu_custom_call.1} parent=1 // pred_fallthru
      _
    // Predicated region
    $region14: #{tpu_custom_call.1} parent=1 // pred_check
      _
    $region15: #{tpu_custom_call.1} parent=1 // pred_check_branch
      %48 = sbr.rel (0) target = $region17
    $region16: #{tpu_custom_call.1} parent=1 // pred_region
      %49 = dma.done [#allocation11], 768
    $region17: #{tpu_custom_call.1} parent=1 // pred_fallthru
      _
    %s50 = smul.u32 0, 128
    %s51 = ssub.s32 8, %s50
    %p52 = scmp.lt.s32.totalorder %s51, 128
    %s53 = scalar_select %p52, %s51, 128
    // While loop
    $region18: #{tpu_custom_call.1} parent=1 // loop_pre_header
      _
    $region19: #{tpu_custom_call.1} parent=1 // loop_header
      %s55 = sphi 0, %s57
      %p56 = scmp.ge.s32.totalorder %s55, %s53
    $region20: #{tpu_custom_call.1} parent=1 // loop_header_branch
      %59 = sbr.rel (%p56) target = $region24
    $region21: #{tpu_custom_call.1} parent=1 // loop_body
      %s60 = sadd.s32 %s50, %s55
      %s61 = sld [smem:[#allocation5 + %s60]]
      %s62 = sld [smem:[#allocation6 + %s60]]
      %s63 = scalar_lea.vmem [#allocation7], %s61
      %v64 = vld [vmem:[%s63] sm:$0x1]
      %s65 = scalar_lea.vmem [#allocation2], %s55
      %66 = vst [vmem:[%s65] sm:$0x1] %v64
      %s67 = scalar_lea.vmem [#allocation10], %s62
      %v68 = vld [vmem:[%s67] sm:$0x1]
      %s69 = scalar_lea.vmem [#allocation3], %s55
      %70 = vst [vmem:[%s69] sm:$0x1] %v68
    $region22: #{tpu_custom_call.1} parent=1 // loop_footer
      %s57 = sadd.s32 %s55, 1
    $region23: #{tpu_custom_call.1} parent=1 // loop_footer_branch
      %54 = sbr.rel target = $region19
    $region24: #{tpu_custom_call.1} parent=1 // loop_exit
      _
    %v71 = vld [vmem:[#allocation2] sm:$0xff]
    %v72 = vld [vmem:[#allocation2 + $0x8] sm:$0xff]
    %v73 = vld [vmem:[#allocation2 + $0x10] sm:$0xff]
    %v74 = vld [vmem:[#allocation2 + $0x18] sm:$0xff]
    %v75 = vld [vmem:[#allocation2 + $0x20] sm:$0xff]
    %v76 = vld [vmem:[#allocation2 + $0x28] sm:$0xff]
    %v77 = vld [vmem:[#allocation2 + $0x30] sm:$0xff]
    %v78 = vld [vmem:[#allocation2 + $0x38] sm:$0xff]
    %v79 = vld [vmem:[#allocation2 + $0x40] sm:$0xff]
    %v80 = vld [vmem:[#allocation2 + $0x48] sm:$0xff]
    %v81 = vld [vmem:[#allocation2 + $0x50] sm:$0xff]
    %v82 = vld [vmem:[#allocation2 + $0x58] sm:$0xff]
    %v83 = vld [vmem:[#allocation2 + $0x60] sm:$0xff]
    %v84 = vld [vmem:[#allocation2 + $0x68] sm:$0xff]
    %v85 = vld [vmem:[#allocation2 + $0x70] sm:$0xff]
    %v86 = vld [vmem:[#allocation2 + $0x78] sm:$0xff]
    %v87 = vld [vmem:[#allocation3] sm:$0xff]
    %v88 = vld [vmem:[#allocation3 + $0x8] sm:$0xff]
    %v89 = vld [vmem:[#allocation3 + $0x10] sm:$0xff]
    %v90 = vld [vmem:[#allocation3 + $0x18] sm:$0xff]
    %v91 = vld [vmem:[#allocation3 + $0x20] sm:$0xff]
    %v92 = vld [vmem:[#allocation3 + $0x28] sm:$0xff]
    %v93 = vld [vmem:[#allocation3 + $0x30] sm:$0xff]
    %v94 = vld [vmem:[#allocation3 + $0x38] sm:$0xff]
    %v95 = vld [vmem:[#allocation3 + $0x40] sm:$0xff]
    %v96 = vld [vmem:[#allocation3 + $0x48] sm:$0xff]
    %v97 = vld [vmem:[#allocation3 + $0x50] sm:$0xff]
    %v98 = vld [vmem:[#allocation3 + $0x58] sm:$0xff]
    %v99 = vld [vmem:[#allocation3 + $0x60] sm:$0xff]
    %v100 = vld [vmem:[#allocation3 + $0x68] sm:$0xff]
    %v101 = vld [vmem:[#allocation3 + $0x70] sm:$0xff]
    %v102 = vld [vmem:[#allocation3 + $0x78] sm:$0xff]
    %v103 = vmul.f32 %v71, %v87
    %v104 = vmul.f32 %v72, %v88
    %v105 = vmul.f32 %v73, %v89
    %v106 = vmul.f32 %v74, %v90
    %v107 = vmul.f32 %v75, %v91
    %v108 = vmul.f32 %v76, %v92
    %v109 = vmul.f32 %v77, %v93
    %v110 = vmul.f32 %v78, %v94
    %v111 = vmul.f32 %v79, %v95
    %v112 = vmul.f32 %v80, %v96
    %v113 = vmul.f32 %v81, %v97
    %v114 = vmul.f32 %v82, %v98
    %v115 = vmul.f32 %v83, %v99
    %v116 = vmul.f32 %v84, %v100
    %v117 = vmul.f32 %v85, %v101
    %v118 = vmul.f32 %v86, %v102
    %119 = vadd.xlane.f32.xlu0 %v103
    %v120 = vpop.xlane.xlu0 %119
    %121 = vadd.xlane.f32.xlu0 %v104
    %v122 = vpop.xlane.xlu0 %121
    %123 = vadd.xlane.f32.xlu0 %v105
    %v124 = vpop.xlane.xlu0 %123
    %125 = vadd.xlane.f32.xlu0 %v106
    %v126 = vpop.xlane.xlu0 %125
    %127 = vadd.xlane.f32.xlu0 %v107
    %v128 = vpop.xlane.xlu0 %127
    %129 = vadd.xlane.f32.xlu0 %v108
    %v130 = vpop.xlane.xlu0 %129
    %131 = vadd.xlane.f32.xlu0 %v109
    %v132 = vpop.xlane.xlu0 %131
    %133 = vadd.xlane.f32.xlu0 %v110
    %v134 = vpop.xlane.xlu0 %133
    %135 = vadd.xlane.f32.xlu0 %v111
    %v136 = vpop.xlane.xlu0 %135
    %137 = vadd.xlane.f32.xlu0 %v112
    %v138 = vpop.xlane.xlu0 %137
    %139 = vadd.xlane.f32.xlu0 %v113
    %v140 = vpop.xlane.xlu0 %139
    %141 = vadd.xlane.f32.xlu0 %v114
    %v142 = vpop.xlane.xlu0 %141
    %143 = vadd.xlane.f32.xlu0 %v115
    %v144 = vpop.xlane.xlu0 %143
    %145 = vadd.xlane.f32.xlu0 %v116
    %v146 = vpop.xlane.xlu0 %145
    %147 = vadd.xlane.f32.xlu0 %v117
    %v148 = vpop.xlane.xlu0 %147
    %149 = vadd.xlane.f32.xlu0 %v118
    %v150 = vpop.xlane.xlu0 %149
    %v167 = vlaneseq
    %v168 = vand.u32 %v167, 127
    %v169 = vlaneseq
    %v170 = vshrl.u32 %v169, 7
    %v171 = vsub.s32 %v168, %v170
    %v172 = vrot.slane %v120, %v171
    %v173 = vadd.s32 %v168, 4294967288
    %v174 = vlaneseq
    %v175 = vshrl.u32 %v174, 7
    %v176 = vsub.s32 %v173, %v175
    %v177 = vrot.slane %v122, %v176
    %vm178 = vcmask 130112
    %v179 = vsel %vm178, %v177, %v172
    %v180 = vadd.s32 %v168, 4294967280
    %v181 = vlaneseq
    %v182 = vshrl.u32 %v181, 7
    %v183 = vsub.s32 %v180, %v182
    %v184 = vrot.slane %v124, %v183
    %vm185 = vcmask 195712
    %v186 = vsel %vm185, %v184, %v179
    %v187 = vadd.s32 %v168, 4294967272
    %v188 = vlaneseq
    %v189 = vshrl.u32 %v188, 7
    %v190 = vsub.s32 %v187, %v189
    %v191 = vrot.slane %v126, %v190
    %vm192 = vcmask 261312
    %v193 = vsel %vm192, %v191, %v186
    %v194 = vadd.s32 %v168, 4294967264
    %v195 = vlaneseq
    %v196 = vshrl.u32 %v195, 7
    %v197 = vsub.s32 %v194, %v196
    %v198 = vrot.slane %v128, %v197
    %vm199 = vcmask 326912
    %v200 = vsel %vm199, %v198, %v193
    %v201 = vadd.s32 %v168, 4294967256
    %v202 = vlaneseq
    %v203 = vshrl.u32 %v202, 7
    %v204 = vsub.s32 %v201, %v203
    %v205 = vrot.slane %v130, %v204
    %vm206 = vcmask 392512
    %v207 = vsel %vm206, %v205, %v200
    %v208 = vadd.s32 %v168, 4294967248
    %v209 = vlaneseq
    %v210 = vshrl.u32 %v209, 7
    %v211 = vsub.s32 %v208, %v210
    %v212 = vrot.slane %v132, %v211
    %vm213 = vcmask 458112
    %v214 = vsel %vm213, %v212, %v207
    %v215 = vadd.s32 %v168, 4294967240
    %v216 = vlaneseq
    %v217 = vshrl.u32 %v216, 7
    %v218 = vsub.s32 %v215, %v217
    %v219 = vrot.slane %v134, %v218
    %vm220 = vcmask 523712
    %v221 = vsel %vm220, %v219, %v214
    %v222 = vadd.s32 %v168, 4294967232
    %v223 = vlaneseq
    %v224 = vshrl.u32 %v223, 7
    %v225 = vsub.s32 %v222, %v224
    %v226 = vrot.slane %v136, %v225
    %vm227 = vcmask 589312
    %v228 = vsel %vm227, %v226, %v221
    %v229 = vadd.s32 %v168, 4294967224
    %v230 = vlaneseq
    %v231 = vshrl.u32 %v230, 7
    %v232 = vsub.s32 %v229, %v231
    %v233 = vrot.slane %v138, %v232
    %vm234 = vcmask 654912
    %v235 = vsel %vm234, %v233, %v228
    %v236 = vadd.s32 %v168, 4294967216
    %v237 = vlaneseq
    %v238 = vshrl.u32 %v237, 7
    %v239 = vsub.s32 %v236, %v238
    %v240 = vrot.slane %v140, %v239
    %vm241 = vcmask 720512
    %v242 = vsel %vm241, %v240, %v235
    %v243 = vadd.s32 %v168, 4294967208
    %v244 = vlaneseq
    %v245 = vshrl.u32 %v244, 7
    %v246 = vsub.s32 %v243, %v245
    %v247 = vrot.slane %v142, %v246
    %vm248 = vcmask 786112
    %v249 = vsel %vm248, %v247, %v242
    %v250 = vadd.s32 %v168, 4294967200
    %v251 = vlaneseq
    %v252 = vshrl.u32 %v251, 7
    %v253 = vsub.s32 %v250, %v252
    %v254 = vrot.slane %v144, %v253
    %vm255 = vcmask 851712
    %v256 = vsel %vm255, %v254, %v249
    %v257 = vadd.s32 %v168, 4294967192
    %v258 = vlaneseq
    %v259 = vshrl.u32 %v258, 7
    %v260 = vsub.s32 %v257, %v259
    %v261 = vrot.slane %v146, %v260
    %vm262 = vcmask 917312
    %v263 = vsel %vm262, %v261, %v256
    %v264 = vadd.s32 %v168, 4294967184
    %v265 = vlaneseq
    %v266 = vshrl.u32 %v265, 7
    %v267 = vsub.s32 %v264, %v266
    %v268 = vrot.slane %v148, %v267
    %vm269 = vcmask 982912
    %v270 = vsel %vm269, %v268, %v263
    %v271 = vadd.s32 %v168, 4294967176
    %v272 = vlaneseq
    %v273 = vshrl.u32 %v272, 7
    %v274 = vsub.s32 %v271, %v273
    %v275 = vrot.slane %v150, %v274
    %vm276 = vcmask 1048512
    %v277 = vsel %vm276, %v275, %v270
    %279 = vst [vmem:[#allocation12] sm:$0x1] %v277
    // Predicated region
    $region25: #{tpu_custom_call.1} parent=1 // pred_check
      _
    $region26: #{tpu_custom_call.1} parent=1 // pred_check_branch
      %281 = sbr.rel (0) target = $region28
    $region27: #{tpu_custom_call.1} parent=1 // pred_region
      %s283 = ssub.s32 16, 16
      %284 = vsyncadd [#allocation9], %s283
      %s286 = sshll.u32 [#allocation12], 4
      %s287 = int_to_ptr.vmem [resolvable:$true] %s286
      %289 = dma.vmem_to_hbm [thread:$0]  %s287, 16, %s4, [#allocation9]
    $region28: #{tpu_custom_call.1} parent=1 // pred_fallthru
      _
    // Predicated region
    $region29: #{tpu_custom_call.1} parent=1 // pred_check
      _
    $region30: #{tpu_custom_call.1} parent=1 // pred_check_branch
      %291 = sbr.rel (0) target = $region32
    $region31: #{tpu_custom_call.1} parent=1 // pred_region
      %292 = dma.done [#allocation9], 16
    $region32: #{tpu_custom_call.1} parent=1 // pred_fallthru
      _
    %293 = vsyncpa [#allocation8], 1
    %294 = vsyncpa [#allocation11], 1
    %295 = vsyncpa [#allocation9], 1

</llo_original>
